<compile_context>
chip_gen: v7x
topology: tpu7x:2x2x1
jax: 0.10.0
libtpu: 0.0.40
codegen_flags: <defaults>
</compile_context>

<pallas_src>
import functools

import jax
import jax.numpy as jnp
from jax import lax
from jax.experimental import pallas as pl
from jax.experimental.pallas import tpu as pltpu


def _conv_stats_kernel(xp_ref, wb_ref, bias_ref, cshift_ref,
                       act_ref, sum_ref, ssq_ref, *, H, d, Nb):
    """Pass 1: dilated conv (conv1x1 folded in), store pre-BN activation and
    accumulate per-lane shifted sum / sum-of-squares across the grid."""
    @pl.when(pl.program_id(0) == 0)
    def _():
        sum_ref[...] = jnp.zeros_like(sum_ref)
        ssq_ref[...] = jnp.zeros_like(ssq_ref)

    # Batch folded into the matmul M dimension: M = Nb*H, 3 MXU matmuls total.
    win = xp_ref[:, 0:H, :].reshape(Nb * H, -1)                    # kh = 0
    acc = jnp.dot(win, wb_ref[0], preferred_element_type=jnp.float32)
    for kh in range(1, 3):
        win = xp_ref[:, kh * d:kh * d + H, :].reshape(Nb * H, -1)
        acc = acc + jnp.dot(win, wb_ref[kh],
                            preferred_element_type=jnp.float32)

    act = acc.reshape(Nb, H, -1) + bias_ref[...]     # (H,Lout) bias broadcasts over Nb
    act_ref[...] = act

    # Shifted (per-channel centered) stats -> avoids E[x^2]-E[x]^2 cancellation.
    cen = (act - cshift_ref[...]).reshape(Nb * H, -1)
    sum_ref[...] += jnp.sum(cen, axis=0, keepdims=True)
    ssq_ref[...] += jnp.sum(cen * cen, axis=0, keepdims=True)


def _bn_relu_kernel(act_ref, scale_ref, shift_ref, o_ref):
    """Pass 2: pure elementwise BN FMA + ReLU (in place over the pass-1 activation)."""
    o_ref[...] = jnp.maximum(act_ref[...] * scale_ref[...] + shift_ref[...], 0.0)


def context_guided_block(x_nchw, w1, b1, w2, b2, gamma, beta,
                         dilation_rate=2, eps=1e-5):
    """Forward pass of ContextGuidedBlock (training-mode BatchNorm).

    x_nchw : (N, Cin, H, W) float32
    w1     : (Cmid, Cin, 1, 1)   conv1x1 weight (PyTorch OIHW)
    b1     : (Cmid,)
    w2     : (Cout, Cmid, 3, 3)  conv3x3 weight (PyTorch OIHW)
    b2     : (Cout,)
    gamma, beta : (Cout,)        BatchNorm affine params
    returns (N, Cout, H, W) float32
    """
    f32, bf16 = jnp.float32, jnp.bfloat16
    N, Cin, H, W = x_nchw.shape
    Cout = w2.shape[0]
    d = dilation_rate
    Hp, Wp = H + 2 * d, W + 2 * d
    Lin, Lout = Wp * Cin, W * Cout               # lane widths of the folded layouts

    # Per-grid-step batch block (folds into the matmul M dim).  Must divide N.
    Nb = next(nb for nb in (8, 4, 2, 1) if N % nb == 0)

    # ---------------- layout / weight prep (plain JAX, trace time) ----------------
    x_nhwc = jnp.transpose(x_nchw, (0, 2, 3, 1)).astype(f32)
    x_pad = jnp.pad(x_nhwc, ((0, 0), (d, d), (d, d), (0, 0)))
    x_fold = x_pad.reshape(N, Hp, Lin).astype(bf16)               # bf16 MXU operand

    # Fold conv1x1 into conv3x3: w_eff[kh,kw] = w1^T @ w2[kh,kw]^T : (Cin, Cout)
    w1_m = jnp.transpose(w1[:, :, 0, 0], (1, 0)).astype(f32)      # (Cin, Cmid)
    w2_t = jnp.transpose(w2, (2, 3, 1, 0)).astype(f32)            # (3, 3, Cmid, Cout)
    w_eff = jnp.einsum('im,hkmo->hkio', w1_m, w2_t)               # (3, 3, Cin, Cout)

    # Banded lane-dense weight per kh: (Wp*Cin, W*Cout) folds the kw-shift and the
    # channel contraction into one MXU matmul per kh.
    kw_i = jnp.arange(3)
    sel = (jnp.arange(Wp)[None, :, None] ==
           jnp.arange(W)[None, None, :] + kw_i[:, None, None] * d).astype(f32)
    bigw = jnp.einsum('kpw,hkio->hpiwo', sel, w_eff)
    bigw = bigw.reshape(3, Lin, Lout).astype(bf16)                # bf16 MXU operand

    # Position-dependent bias map: b2 + sum over in-bounds taps of (b1 @ w2[kh,kw]).
    # (Zero-padding applies to y1 = conv1x1(x)+b1, so b1 only enters via taps whose
    # source pixel lies in the valid region.)
    bvec = jnp.einsum('m,hkmo->hko', b1.astype(f32), w2_t)        # (3, 3, Cout)
    in_h = ((jnp.arange(H)[:, None] + (kw_i[None, :] - 1) * d >= 0) &
            (jnp.arange(H)[:, None] + (kw_i[None, :] - 1) * d < H)).astype(f32)
    in_w = ((jnp.arange(W)[:, None] + (kw_i[None, :] - 1) * d >= 0) &
            (jnp.arange(W)[:, None] + (kw_i[None, :] - 1) * d < W)).astype(f32)
    bias_fold = (b2.astype(f32)[None, None, :] +
                 jnp.einsum('hk,wl,klo->hwo', in_h, in_w, bvec)).reshape(H, Lout)

    # Per-channel centering constant for the stats, tiled to the lane layout.
    shift_chan = bias_fold.reshape(H, W, Cout).mean(axis=(0, 1))  # (Cout,)
    cshift_fold = jnp.tile(shift_chan, W).reshape(1, Lout)

    x_spec = pl.BlockSpec((Nb, Hp, Lin), lambda n: (n, 0, 0))
    w_spec = pl.BlockSpec((3, Lin, Lout), lambda n: (0, 0, 0))
    b_spec = pl.BlockSpec((H, Lout), lambda n: (0, 0))
    v_spec = pl.BlockSpec((1, Lout), lambda n: (0, 0))
    a_spec = pl.BlockSpec((Nb, H, Lout), lambda n: (n, 0, 0))
    grid = (N // Nb,)

    # --- pass 1: conv (bf16 MXU, f32 acc) + activation store + global batch stats ---
    act, lane_sum, lane_ssq = pl.pallas_call(
        functools.partial(_conv_stats_kernel, H=H, d=d, Nb=Nb),
        out_shape=[jax.ShapeDtypeStruct((N, H, Lout), f32),
                   jax.ShapeDtypeStruct((1, Lout), f32),
                   jax.ShapeDtypeStruct((1, Lout), f32)],
        grid_spec=pltpu.PrefetchScalarGridSpec(
            num_scalar_prefetch=0,
            grid=grid,
            in_specs=[x_spec, w_spec, b_spec, v_spec],
            out_specs=[a_spec, v_spec, v_spec],
        ),
        compiler_params=pltpu.CompilerParams(
            dimension_semantics=("arbitrary",)),
    )(x_fold, bigw, bias_fold, cshift_fold)

    # Fold centered lane stats -> per-channel mean/var -> per-lane BN scale/shift.
    count = float(N * H * W)
    s1_c = lane_sum.reshape(W, Cout).sum(axis=0)
    s2_c = lane_ssq.reshape(W, Cout).sum(axis=0)
    mean = shift_chan + s1_c / count
    var = s2_c / count - (s1_c / count) ** 2                      # biased var (BN fwd)
    scale_c = gamma.astype(f32) * lax.rsqrt(var + eps)
    shift_c = beta.astype(f32) - mean * scale_c
    scale_fold = jnp.tile(scale_c, W).reshape(1, Lout)
    shift_fold = jnp.tile(shift_c, W).reshape(1, Lout)

    # --- pass 2: elementwise BN FMA + ReLU, in place on the pass-1 activation ---
    out_fold = pl.pallas_call(
        _bn_relu_kernel,
        out_shape=jax.ShapeDtypeStruct((N, H, Lout), f32),
        grid_spec=pltpu.PrefetchScalarGridSpec(
            num_scalar_prefetch=0,
            grid=grid,
            in_specs=[a_spec, v_spec, v_spec],
            out_specs=a_spec,
        ),
        input_output_aliases={0: 0},
        compiler_params=pltpu.CompilerParams(
            dimension_semantics=("parallel",)),
    )(act, scale_fold, shift_fold)

    out_nhwc = out_fold.reshape(N, H, W, Cout)
    return jnp.transpose(out_nhwc, (0, 3, 1, 2))


def _reference(x, w1, b1, w2, b2, gamma, beta, d=2, eps=1e-5):
    """Pure-JAX reference mirroring the PyTorch module (training-mode BN)."""
    dn = ("NCHW", "OIHW", "NCHW")
    y = lax.conv_general_dilated(x, w1, (1, 1), "VALID", dimension_numbers=dn)
    y = y + b1.reshape(1, -1, 1, 1)
    y = lax.conv_general_dilated(y, w2, (1, 1), ((d, d), (d, d)),
                                 rhs_dilation=(d, d), dimension_numbers=dn)
    y = y + b2.reshape(1, -1, 1, 1)
    mean = jnp.mean(y, axis=(0, 2, 3), keepdims=True)
    var = jnp.mean((y - mean) ** 2, axis=(0, 2, 3), keepdims=True)
    y = (y - mean) * lax.rsqrt(var + eps)
    y = y * gamma.reshape(1, -1, 1, 1) + beta.reshape(1, -1, 1, 1)
    return jnp.maximum(y, 0.0)


if __name__ == "__main__":
    # Small shapes consistent with the module: nIn=4, nOut=8, dilation=2.
    N, nIn, H, W = 2, 4, 16, 16
    nOut, dilation = 8, 2
    Cmid = nOut // 2

    key = jax.random.PRNGKey(0)
    k = jax.random.split(key, 6)
    x = jax.random.normal(k[0], (N, nIn, H, W), jnp.float32)

    # Deterministic parameter init (shapes per nn.Conv2d / nn.BatchNorm2d).
    w1 = 0.1 * jax.random.normal(k[1], (Cmid, nIn, 1, 1), jnp.float32)
    b1 = 0.1 * jax.random.normal(k[2], (Cmid,), jnp.float32)
    w2 = 0.1 * jax.random.normal(k[3], (nOut, Cmid, 3, 3), jnp.float32)
    b2 = 0.1 * jax.random.normal(k[4], (nOut,), jnp.float32)
    gamma = jnp.ones((nOut,), jnp.float32)   # BN weight init
    beta = jnp.zeros((nOut,), jnp.float32)   # BN bias init

    out = context_guided_block(x, w1, b1, w2, b2, gamma, beta,
                               dilation_rate=dilation)
    out = jax.block_until_ready(out)

    ref = jax.block_until_ready(_reference(x, w1, b1, w2, b2, gamma, beta,
                                           d=dilation))
    assert out.shape == (N, nOut, H, W)
    # Tolerance loosened for bf16 MXU inputs (f32 accumulation / stats / BN math).
    assert jnp.allclose(out, ref, atol=5e-2, rtol=5e-2), (
        float(jnp.max(jnp.abs(out - ref))))
    print("KERNEL_OK")
</pallas_src>

<mosaic_0001>
module attributes {stable_mosaic.version = 11 : i64} {
  func.func @_conv_stats_kernel(%arg0: i32, %arg1: memref<2x20x80xbf16, #tpu.memory_space<vmem>>, %arg2: memref<3x80x128xbf16, #tpu.memory_space<vmem>>, %arg3: memref<16x128xf32, #tpu.memory_space<vmem>>, %arg4: memref<1x128xf32, #tpu.memory_space<vmem>>, %arg5: memref<2x16x128xf32, #tpu.memory_space<vmem>>, %arg6: memref<1x128xf32, #tpu.memory_space<vmem>>, %arg7: memref<1x128xf32, #tpu.memory_space<vmem>>) attributes {dimension_semantics = [#tpu.dimension_semantics<arbitrary>], iteration_bounds = array<i64: 1>, scalar_prefetch = 0 : i64, scratch_operands = 0 : i64, tpu.core_type = #tpu.core_type<tc>, window_params = [{transform_indices = @transform_0, window_bounds = array<i64: 2, 20, 80>}, {pipeline_mode = #tpu.pipeline_mode<synchronous>, transform_indices = @transform_1, window_bounds = array<i64: 3, 80, 128>}, {pipeline_mode = #tpu.pipeline_mode<synchronous>, transform_indices = @transform_2, window_bounds = array<i64: 16, 128>}, {pipeline_mode = #tpu.pipeline_mode<synchronous>, transform_indices = @transform_3, window_bounds = array<i64: 1, 128>}, {transform_indices = @transform_4, window_bounds = array<i64: 2, 16, 128>}, {pipeline_mode = #tpu.pipeline_mode<synchronous>, transform_indices = @transform_5, window_bounds = array<i64: 1, 128>}, {pipeline_mode = #tpu.pipeline_mode<synchronous>, transform_indices = @transform_6, window_bounds = array<i64: 1, 128>}]} {
    %c0_i32 = arith.constant 0 : i32
    %0 = arith.cmpi eq, %arg0, %c0_i32 : i32
    %1 = arith.extui %0 : i1 to i32
    %c0_i32_0 = arith.constant 0 : i32
    %2 = arith.cmpi ne, %1, %c0_i32_0 : i32
    scf.if %2 {
      %cst_34 = arith.constant 0.000000e+00 : f32
      %42 = vector.broadcast %cst_34 : f32 to vector<1x128xf32>
      %c0_35 = arith.constant 0 : index
      %c0_36 = arith.constant 0 : index
      %43 = vector.load %arg6[%c0_35, %c0_36] : memref<1x128xf32, #tpu.memory_space<vmem>>, vector<1x128xf32>
      tpu.vector_store %arg6[%c0_35, %c0_36], %42 {strides = array<i32>} : memref<1x128xf32, #tpu.memory_space<vmem>>, vector<1x128xf32>,
      %cst_37 = arith.constant 0.000000e+00 : f32
      %44 = vector.broadcast %cst_37 : f32 to vector<1x128xf32>
      %c0_38 = arith.constant 0 : index
      %c0_39 = arith.constant 0 : index
      %45 = vector.load %arg7[%c0_38, %c0_39] : memref<1x128xf32, #tpu.memory_space<vmem>>, vector<1x128xf32>
      tpu.vector_store %arg7[%c0_38, %c0_39], %44 {strides = array<i32>} : memref<1x128xf32, #tpu.memory_space<vmem>>, vector<1x128xf32>,
    } else {
    }
    %c0 = arith.constant 0 : index
    %c0_1 = arith.constant 0 : index
    %c0_2 = arith.constant 0 : index
    %3 = vector.load %arg1[%c0, %c0_1, %c0_2] : memref<2x20x80xbf16, #tpu.memory_space<vmem>>, vector<2x16x80xbf16>
    %4 = vector.shape_cast %3 : vector<2x16x80xbf16> to vector<32x80xbf16>
    %c0_3 = arith.constant 0 : index
    %c0_4 = arith.constant 0 : index
    %c0_5 = arith.constant 0 : index
    %5 = vector.load %arg2[%c0_3, %c0_4, %c0_5] : memref<3x80x128xbf16, #tpu.memory_space<vmem>>, vector<1x80x128xbf16>
    %6 = vector.shape_cast %5 : vector<1x80x128xbf16> to vector<80x128xbf16>
    %cst = arith.constant dense<0.000000e+00> : vector<32x128xf32>
    %7 = tpu.matmul %4, %6, %cst {dimension_numbers = #tpu.dot_dimension_numbers<[1], [0], [0], [1], [0, 0, 1, 1], [], []>} : vector<32x80xbf16>, vector<80x128xbf16>, vector<32x128xf32> -> vector<32x128xf32>
    %c0_6 = arith.constant 0 : index
    %c2 = arith.constant 2 : index
    %c0_7 = arith.constant 0 : index
    %8 = vector.load %arg1[%c0_6, %c2, %c0_7] : memref<2x20x80xbf16, #tpu.memory_space<vmem>>, vector<2x16x80xbf16>
    %9 = vector.shape_cast %8 : vector<2x16x80xbf16> to vector<32x80xbf16>
    %c1 = arith.constant 1 : index
    %c0_8 = arith.constant 0 : index
    %c0_9 = arith.constant 0 : index
    %10 = vector.load %arg2[%c1, %c0_8, %c0_9] : memref<3x80x128xbf16, #tpu.memory_space<vmem>>, vector<1x80x128xbf16>
    %11 = vector.shape_cast %10 : vector<1x80x128xbf16> to vector<80x128xbf16>
    %cst_10 = arith.constant dense<0.000000e+00> : vector<32x128xf32>
    %12 = tpu.matmul %9, %11, %cst_10 {dimension_numbers = #tpu.dot_dimension_numbers<[1], [0], [0], [1], [0, 0, 1, 1], [], []>} : vector<32x80xbf16>, vector<80x128xbf16>, vector<32x128xf32> -> vector<32x128xf32>
    %13 = arith.addf %7, %12 : vector<32x128xf32>
    %c0_11 = arith.constant 0 : index
    %c4 = arith.constant 4 : index
    %c0_12 = arith.constant 0 : index
    %14 = vector.load %arg1[%c0_11, %c4, %c0_12] : memref<2x20x80xbf16, #tpu.memory_space<vmem>>, vector<2x16x80xbf16>
    %15 = vector.shape_cast %14 : vector<2x16x80xbf16> to vector<32x80xbf16>
    %c2_13 = arith.constant 2 : index
    %c0_14 = arith.constant 0 : index
    %c0_15 = arith.constant 0 : index
    %16 = vector.load %arg2[%c2_13, %c0_14, %c0_15] : memref<3x80x128xbf16, #tpu.memory_space<vmem>>, vector<1x80x128xbf16>
    %17 = vector.shape_cast %16 : vector<1x80x128xbf16> to vector<80x128xbf16>
    %cst_16 = arith.constant dense<0.000000e+00> : vector<32x128xf32>
    %18 = tpu.matmul %15, %17, %cst_16 {dimension_numbers = #tpu.dot_dimension_numbers<[1], [0], [0], [1], [0, 0, 1, 1], [], []>} : vector<32x80xbf16>, vector<80x128xbf16>, vector<32x128xf32> -> vector<32x128xf32>
    %19 = arith.addf %13, %18 : vector<32x128xf32>
    %20 = vector.shape_cast %19 : vector<32x128xf32> to vector<2x16x128xf32>
    %c0_17 = arith.constant 0 : index
    %c0_18 = arith.constant 0 : index
    %21 = vector.load %arg3[%c0_17, %c0_18] : memref<16x128xf32, #tpu.memory_space<vmem>>, vector<16x128xf32>
    %22 = vector.shape_cast %21 : vector<16x128xf32> to vector<1x16x128xf32>
    %23 = vector.broadcast %22 : vector<1x16x128xf32> to vector<2x16x128xf32>
    %24 = arith.addf %20, %23 : vector<2x16x128xf32>
    %c0_19 = arith.constant 0 : index
    %c0_20 = arith.constant 0 : index
    %c0_21 = arith.constant 0 : index
    %25 = vector.load %arg5[%c0_19, %c0_20, %c0_21] : memref<2x16x128xf32, #tpu.memory_space<vmem>>, vector<2x16x128xf32>
    tpu.vector_store %arg5[%c0_19, %c0_20, %c0_21], %24 {strides = array<i32>} : memref<2x16x128xf32, #tpu.memory_space<vmem>>, vector<2x16x128xf32>,
    %c0_22 = arith.constant 0 : index
    %c0_23 = arith.constant 0 : index
    %26 = vector.load %arg4[%c0_22, %c0_23] : memref<1x128xf32, #tpu.memory_space<vmem>>, vector<1x128xf32>
    %27 = vector.shape_cast %26 : vector<1x128xf32> to vector<1x1x128xf32>
    %28 = vector.broadcast %27 : vector<1x1x128xf32> to vector<2x16x128xf32>
    %29 = arith.subf %24, %28 : vector<2x16x128xf32>
    %30 = vector.shape_cast %29 : vector<2x16x128xf32> to vector<32x128xf32>
    %c0_24 = arith.constant 0 : index
    %c0_25 = arith.constant 0 : index
    %31 = vector.load %arg6[%c0_24, %c0_25] : memref<1x128xf32, #tpu.memory_space<vmem>>, vector<1x128xf32>
    %cst_26 = arith.constant dense<0.000000e+00> : vector<128xf32>
    %32 = vector.multi_reduction <add>, %30, %cst_26 [0] : vector<32x128xf32> to vector<128xf32>
    %33 = vector.shape_cast %32 : vector<128xf32> to vector<1x128xf32>
    %34 = arith.addf %31, %33 : vector<1x128xf32>
    %c0_27 = arith.constant 0 : index
    %c0_28 = arith.constant 0 : index
    %35 = vector.load %arg6[%c0_27, %c0_28] : memref<1x128xf32, #tpu.memory_space<vmem>>, vector<1x128xf32>
    tpu.vector_store %arg6[%c0_27, %c0_28], %34 {strides = array<i32>} : memref<1x128xf32, #tpu.memory_space<vmem>>, vector<1x128xf32>,
    %c0_29 = arith.constant 0 : index
    %c0_30 = arith.constant 0 : index
    %36 = vector.load %arg7[%c0_29, %c0_30] : memref<1x128xf32, #tpu.memory_space<vmem>>, vector<1x128xf32>
    %37 = arith.mulf %30, %30 : vector<32x128xf32>
    %cst_31 = arith.constant dense<0.000000e+00> : vector<128xf32>
    %38 = vector.multi_reduction <add>, %37, %cst_31 [0] : vector<32x128xf32> to vector<128xf32>
    %39 = vector.shape_cast %38 : vector<128xf32> to vector<1x128xf32>
    %40 = arith.addf %36, %39 : vector<1x128xf32>
    %c0_32 = arith.constant 0 : index
    %c0_33 = arith.constant 0 : index
    %41 = vector.load %arg7[%c0_32, %c0_33] : memref<1x128xf32, #tpu.memory_space<vmem>>, vector<1x128xf32>
    tpu.vector_store %arg7[%c0_32, %c0_33], %40 {strides = array<i32>} : memref<1x128xf32, #tpu.memory_space<vmem>>, vector<1x128xf32>,
    return
  }
  func.func @transform_0(%arg0: i32) -> (i32, i32, i32) {
    %c0_i32 = arith.constant 0 : i32
    %c0_i32_0 = arith.constant 0 : i32
    %c0_i32_1 = arith.constant 0 : i32
    return %arg0, %c0_i32, %c0_i32_0 : i32, i32, i32
  }
  func.func @transform_1(%arg0: i32) -> (i32, i32, i32) {
    %c0_i32 = arith.constant 0 : i32
    %c0_i32_0 = arith.constant 0 : i32
    %c0_i32_1 = arith.constant 0 : i32
    %c0_i32_2 = arith.constant 0 : i32
    return %c0_i32, %c0_i32_0, %c0_i32_1 : i32, i32, i32
  }
  func.func @transform_2(%arg0: i32) -> (i32, i32) {
    %c0_i32 = arith.constant 0 : i32
    %c0_i32_0 = arith.constant 0 : i32
    %c0_i32_1 = arith.constant 0 : i32
    return %c0_i32, %c0_i32_0 : i32, i32
  }
  func.func @transform_3(%arg0: i32) -> (i32, i32) {
    %c0_i32 = arith.constant 0 : i32
    %c0_i32_0 = arith.constant 0 : i32
    %c0_i32_1 = arith.constant 0 : i32
    return %c0_i32, %c0_i32_0 : i32, i32
  }
  func.func @transform_4(%arg0: i32) -> (i32, i32, i32) {
    %c0_i32 = arith.constant 0 : i32
    %c0_i32_0 = arith.constant 0 : i32
    %c0_i32_1 = arith.constant 0 : i32
    return %arg0, %c0_i32, %c0_i32_0 : i32, i32, i32
  }
  func.func @transform_5(%arg0: i32) -> (i32, i32) {
    %c0_i32 = arith.constant 0 : i32
    %c0_i32_0 = arith.constant 0 : i32
    %c0_i32_1 = arith.constant 0 : i32
    return %c0_i32, %c0_i32_0 : i32, i32
  }
  func.func @transform_6(%arg0: i32) -> (i32, i32) {
    %c0_i32 = arith.constant 0 : i32
    %c0_i32_0 = arith.constant 0 : i32
    %c0_i32_1 = arith.constant 0 : i32
    return %c0_i32, %c0_i32_0 : i32, i32
  }
}

</mosaic_0001>

<llo_original>
// kernel: tpu_custom_call.1
$region0: #{tpu_custom_call.1}
  #allocation0 [shape = 'u32[]', space=smem, size = 0x4, offset = 0x4, fixed_abs, tag = 'smem constant byte address 0x4 - core index']
  #allocation1 [shape = 'u32[144,128]{1,0:T(1,128)}', space=vmem, size = 0x12000, scoped, tag = 'internal scratch']
  %s0 = inlined_call_operand.vmem [shape: bf16[2,20,80], index: 0, kind: input, shape index: {}]
  %s1 = inlined_call_operand.hbm [shape: bf16[3,80,128], index: 1, kind: input, shape index: {}]
  %s2 = inlined_call_operand.vmem [shape: f32[16,128], index: 2, kind: input, shape index: {}]
  %s3 = inlined_call_operand.vmem [shape: f32[1,128], index: 3, kind: input, shape index: {}]
  %s4 = inlined_call_operand.hbm [shape: f32[2,16,128], index: 4, kind: output, shape index: {0}]
  %s5 = inlined_call_operand.hbm [shape: f32[1,128], index: 5, kind: output, shape index: {1}]
  %s6 = inlined_call_operand.hbm [shape: f32[1,128], index: 6, kind: output, shape index: {2}]
  %7 = xla_tuple %s4, %s5, %s6
  %s8 = sld [smem:[#allocation0]]
  $region50: #{tpu_custom_call.1} parent=0
    _
  %s10 = ssub.s32 1, %s8
  %s11 = scalar_select 0, %s10, %s8
  $region1: #{tpu_custom_call.1} parent=0
    #allocation2 [shape = 'u8[61440]{0}', space=vmem, size = 0xf000, scoped, tag = 'input window, operand 1, single buffered']
    #allocation3 [shape = 's32[1]{0}', space=sflag, size = 0x4, scoped, tag = 'scoped memory for tpu_custom_call.1']
    #allocation4 [shape = 's32[1]{0}', space=sflag, size = 0x4, scoped, tag = 'scoped memory for tpu_custom_call.1']
    #allocation5 [shape = 'u8[16384]{0}', space=vmem, size = 0x4000, scoped, tag = 'output window, operand 0, single buffered']
    #allocation6 [shape = 'u8[512]{0}', space=vmem, size = 0x400, scoped, tag = 'output window, operand 1, single buffered']
    #allocation7 [shape = 's32[1]{0}', space=sflag, size = 0x4, scoped, tag = 'scoped memory for tpu_custom_call.1']
    #allocation8 [shape = 'u8[512]{0}', space=vmem, size = 0x400, scoped, tag = 'output window, operand 2, single buffered']
    %12 = vsyncpa [#allocation3], 0
    %13 = vsyncpa [#allocation4], 0
    %14 = vsyncpa [#allocation7], 0
    // Predicated region
    $region2: #{tpu_custom_call.1} parent=1 // pred_check
      _
    $region3: #{tpu_custom_call.1} parent=1 // pred_check_branch
      %16 = sbr.rel (0) target = $region5
    $region4: #{tpu_custom_call.1} parent=1 // pred_region
      _
    $region5: #{tpu_custom_call.1} parent=1 // pred_fallthru
      _
    // Predicated region
    $region6: #{tpu_custom_call.1} parent=1 // pred_check
      _
    $region7: #{tpu_custom_call.1} parent=1 // pred_check_branch
      %18 = sbr.rel (0) target = $region9
    $region8: #{tpu_custom_call.1} parent=1 // pred_region
      %s20 = ssub.s32 1920, 1920
      %21 = vsyncadd [#allocation3], %s20
      %s22 = sshll.u32 [#allocation2], 4
      %s23 = int_to_ptr.vmem [resolvable:$true] %s22
      %28 = dma.hbm_to_vmem [thread:$0]  %s1, 1920, %s23, [#allocation3], 64, 64, 4
    $region9: #{tpu_custom_call.1} parent=1 // pred_fallthru
      _
    // Predicated region
    $region10: #{tpu_custom_call.1} parent=1 // pred_check
      _
    $region11: #{tpu_custom_call.1} parent=1 // pred_check_branch
      %30 = sbr.rel (0) target = $region13
    $region12: #{tpu_custom_call.1} parent=1 // pred_region
      _
    $region13: #{tpu_custom_call.1} parent=1 // pred_fallthru
      _
    // Predicated region
    $region14: #{tpu_custom_call.1} parent=1 // pred_check
      _
    $region15: #{tpu_custom_call.1} parent=1 // pred_check_branch
      %32 = sbr.rel (0) target = $region17
    $region16: #{tpu_custom_call.1} parent=1 // pred_region
      _
    $region17: #{tpu_custom_call.1} parent=1 // pred_fallthru
      _
    // Predicated region
    $region18: #{tpu_custom_call.1} parent=1 // pred_check
      _
    $region19: #{tpu_custom_call.1} parent=1 // pred_check_branch
      %34 = sbr.rel (0) target = $region21
    $region20: #{tpu_custom_call.1} parent=1 // pred_region
      %35 = dma.done [#allocation3], 1920
    $region21: #{tpu_custom_call.1} parent=1 // pred_fallthru
      _
    %p37 = scmp.eq.s32.totalorder 0, 0
    // Predicated region
    $region22: #{tpu_custom_call.1} parent=1 // pred_check
      %p38 = pneg %p37
    $region23: #{tpu_custom_call.1} parent=1 // pred_check_branch
      %40 = sbr.rel (%p38) target = $region25
    $region24: #{tpu_custom_call.1} parent=1 // pred_region
      %41 = vst [vmem:[#allocation6] sm:$0x1] 0.0
      %42 = vst [vmem:[#allocation8] sm:$0x1] 0.0
    $region25: #{tpu_custom_call.1} parent=1 // pred_fallthru
      _
    %v43 = vld [vmem:[%s0] sm:$0xf]
    %v44 = vld [vmem:[%s0 + $0x4] sm:$0xf]
    %v45 = vld [vmem:[%s0 + $0xc] sm:$0xf]
    %v46 = vld [vmem:[%s0 + $0x10] sm:$0xf]
    %v47 = vld [vmem:[#allocation2] sm:$0xf]
    %v48 = vld [vmem:[#allocation2 + $0x4] sm:$0xf]
    %v49 = vld [vmem:[#allocation2 + $0x8] sm:$0xf]
    %v50 = vld [vmem:[#allocation2 + $0xc] sm:$0xf]
    %v51 = vld [vmem:[#allocation2 + $0x10] sm:$0xf]
    %v52 = vld [vmem:[#allocation2 + $0x14] sm:$0xf]
    %v53 = vld [vmem:[#allocation2 + $0x18] sm:$0xf]
    %v54 = vld [vmem:[#allocation2 + $0x1c] sm:$0xf]
    %v55 = vld [vmem:[#allocation2 + $0x20] sm:$0xf]
    %v56 = vld [vmem:[#allocation2 + $0x24] sm:$0xf]
    %v57 = vld [vmem:[%s0] sm:$0xe]
    %v58 = vld [vmem:[%s0 + $0x8] sm:$0x1]
    %v59 = vld [vmem:[%s0 + $0xc] sm:$0xe]
    %v60 = vld [vmem:[%s0 + $0x14] sm:$0x1]
    %vm67 = vcmask 1042432
    %vm68 = vcmask 1046532
    %vm69 = vmor %vm67, %vm68
    %v70 = vrot.slane %v57, 5
    %v71 = vrot.slane %v70, 4
    %v72 = vrot.slane %v44, 5
    %v73 = vsel %vm69, %v71, %v72
    %v74 = vrot.slane %v72, 4
    %v75 = vrot.slane %v58, 5
    %v76 = vsel %vm69, %v74, %v75
    %v77 = vrot.slane %v59, 5
    %v78 = vrot.slane %v77, 4
    %v79 = vrot.slane %v46, 5
    %v80 = vsel %vm69, %v78, %v79
    %v81 = vrot.slane %v79, 4
    %v82 = vrot.slane %v60, 5
    %v83 = vsel %vm69, %v81, %v82
    %s84 = scalar_lea.vmem [#allocation2], 40
    %v85 = vld [vmem:[%s84] sm:$0xf]
    %v86 = vld [vmem:[%s84 + $0x4] sm:$0xf]
    %v87 = vld [vmem:[%s84 + $0x8] sm:$0xf]
    %v88 = vld [vmem:[%s84 + $0xc] sm:$0xf]
    %v89 = vld [vmem:[%s84 + $0x10] sm:$0xf]
    %v90 = vld [vmem:[%s84 + $0x14] sm:$0xf]
    %v91 = vld [vmem:[%s84 + $0x18] sm:$0xf]
    %v92 = vld [vmem:[%s84 + $0x1c] sm:$0xf]
    %v93 = vld [vmem:[%s84 + $0x20] sm:$0xf]
    %v94 = vld [vmem:[%s84 + $0x24] sm:$0xf]
    %v95 = vunpack.c.l.b16 %v73
    %v96 = vunpack.c.l.b16 %v76
    %v97 = vunpack.c.l.b16 %v80
    %v98 = vunpack.c.l.b16 %v83
    %v99 = vpack.c.b16 %v96, %v95
    %v100 = vpack.c.b16 %v98, %v97
    %v111 = vunpack.c.l.b16 %v85
    %v112 = vunpack.c.l.b16 %v86
    %v113 = vunpack.c.l.b16 %v87
    %v114 = vunpack.c.l.b16 %v88
    %v115 = vunpack.c.l.b16 %v89
    %v116 = vunpack.c.l.b16 %v90
    %v117 = vunpack.c.l.b16 %v91
    %v118 = vunpack.c.l.b16 %v92
    %v119 = vunpack.c.l.b16 %v93
    %v120 = vunpack.c.l.b16 %v94
    %v121 = vpack.c.b16 %v112, %v111
    %v122 = vpack.c.b16 %v114, %v113
    %v123 = vpack.c.b16 %v116, %v115
    %v124 = vpack.c.b16 %v118, %v117
    %v125 = vpack.c.b16 %v120, %v119
    %vm131 = vcmask 654336
    %v133 = vsel %vm131, %v99, 0
    %v136 = vsel %vm131, %v100, 0
    %138 = vmatprep.subr.bf16.mxu0 0
    %139 = vmatpush1.bf16.msra.mxu0 %v121
    %140 = vmatprep.subr.bf16.mxu0 0
    %141 = vmatpush1.bf16.msra.mxu0 %v122
    %142 = vmatprep.subr.bf16.mxu0 0
    %143 = vmatpush1.bf16.msra.mxu0 %v123
    %144 = vmatprep.subr.bf16.mxu0 0
    %145 = vmatpush1.bf16.msra.mxu0 %v124
    %146 = vmatprep.subr.bf16.mxu0 0
    %147 = vmatpush1.bf16.msra.mxu0 %v125
    %148 = vmatprep.subr.bf16.mxu0 0
    %149 = vmatpush1.bf16.msra.mxu0 0
    %150 = vmatprep.subr.bf16.mxu0 0
    %151 = vmatpush1.bf16.msra.mxu0 0
    %152 = vmatprep.subr.bf16.mxu0 0
    %153 = vmatpush1.bf16.msra.mxu0 0
    %154 = vmatprep.subr.bf16.mxu0 0
    %155 = vmatpush1.bf16.msra.mxu0 0
    %156 = vmatprep.subr.bf16.mxu0 0
    %157 = vmatpush1.bf16.msra.mxu0 0
    %158 = vmatprep.subr.bf16.mxu0 0
    %159 = vmatpush1.bf16.msra.mxu0 0
    %160 = vmatprep.subr.bf16.mxu0 0
    %161 = vmatpush1.bf16.msra.mxu0 0
    %162 = vmatprep.subr.bf16.mxu0 0
    %163 = vmatpush1.bf16.msra.mxu0 0
    %164 = vmatprep.subr.bf16.mxu0 0
    %165 = vmatpush1.bf16.msra.mxu0 0
    %166 = vmatprep.subr.bf16.mxu0 0
    %167 = vmatpush1.bf16.msra.mxu0 0
    %168 = vmatprep.subr.bf16.mxu0 0
    %169 = vmatpush1.bf16.msra.mxu0 0
    %170 = vmatprep.mubr.bf16.mxu0 0
    %171 = vmatmul.mubr.bf16.gmra.mrb[0].mxu0 %v133
    %v172 = vpop.f32.mrb[0].mxu0
    %v173 = vadd.f32 0.0, %v172
    %v174 = vpop.f32.mrb[0].mxu0
    %v175 = vpop.f32.mrb[0].mxu0
    %v176 = vadd.f32 0.0, %v175
    %v177 = vpop.f32.mrb[0].mxu0
    %178 = vmatprep.mubr.bf16.mxu0 0
    %179 = vmatmul.mubr.bf16.gmra.mrb[0].mxu0 %v136
    %v180 = vpop.f32.mrb[0].mxu0
    %v181 = vadd.f32 0.0, %v180
    %v182 = vpop.f32.mrb[0].mxu0
    %v183 = vpop.f32.mrb[0].mxu0
    %v184 = vadd.f32 0.0, %v183
    %v185 = vpop.f32.mrb[0].mxu0
    %186 = vdwg.mxu0
    %v189 = vunpack.c.l.b16 %v43
    %v190 = vunpack.c.l.b16 %v44
    %v191 = vunpack.c.l.b16 %v45
    %v192 = vunpack.c.l.b16 %v46
    %v193 = vpack.c.b16 %v190, %v189
    %v194 = vpack.c.b16 %v192, %v191
    %v205 = vunpack.c.l.b16 %v47
    %v206 = vunpack.c.l.b16 %v48
    %v207 = vunpack.c.l.b16 %v49
    %v208 = vunpack.c.l.b16 %v50
    %v209 = vunpack.c.l.b16 %v51
    %v210 = vunpack.c.l.b16 %v52
    %v211 = vunpack.c.l.b16 %v53
    %v212 = vunpack.c.l.b16 %v54
    %v213 = vunpack.c.l.b16 %v55
    %v214 = vunpack.c.l.b16 %v56
    %v215 = vpack.c.b16 %v206, %v205
    %v216 = vpack.c.b16 %v208, %v207
    %v217 = vpack.c.b16 %v210, %v209
    %v218 = vpack.c.b16 %v212, %v211
    %v219 = vpack.c.b16 %v214, %v213
    %v226 = vsel %vm131, %v193, 0
    %v229 = vsel %vm131, %v194, 0
    %231 = vmatprep.subr.bf16.mxu0 0
    %232 = vmatpush1.bf16.msra.mxu0 %v215
    %233 = vmatprep.subr.bf16.mxu0 0
    %234 = vmatpush1.bf16.msra.mxu0 %v216
    %235 = vmatprep.subr.bf16.mxu0 0
    %236 = vmatpush1.bf16.msra.mxu0 %v217
    %237 = vmatprep.subr.bf16.mxu0 0
    %238 = vmatpush1.bf16.msra.mxu0 %v218
    %239 = vmatprep.subr.bf16.mxu0 0
    %240 = vmatpush1.bf16.msra.mxu0 %v219
    %241 = vmatprep.subr.bf16.mxu0 0
    %242 = vmatpush1.bf16.msra.mxu0 0
    %243 = vmatprep.subr.bf16.mxu0 0
    %244 = vmatpush1.bf16.msra.mxu0 0
    %245 = vmatprep.subr.bf16.mxu0 0
    %246 = vmatpush1.bf16.msra.mxu0 0
    %247 = vmatprep.subr.bf16.mxu0 0
    %248 = vmatpush1.bf16.msra.mxu0 0
    %249 = vmatprep.subr.bf16.mxu0 0
    %250 = vmatpush1.bf16.msra.mxu0 0
    %251 = vmatprep.subr.bf16.mxu0 0
    %252 = vmatpush1.bf16.msra.mxu0 0
    %253 = vmatprep.subr.bf16.mxu0 0
    %254 = vmatpush1.bf16.msra.mxu0 0
    %255 = vmatprep.subr.bf16.mxu0 0
    %256 = vmatpush1.bf16.msra.mxu0 0
    %257 = vmatprep.subr.bf16.mxu0 0
    %258 = vmatpush1.bf16.msra.mxu0 0
    %259 = vmatprep.subr.bf16.mxu0 0
    %260 = vmatpush1.bf16.msra.mxu0 0
    %261 = vmatprep.subr.bf16.mxu0 0
    %262 = vmatpush1.bf16.msra.mxu0 0
    %263 = vmatprep.mubr.bf16.mxu0 0
    %264 = vmatmul.mubr.bf16.gmra.mrb[0].mxu0 %v226
    %v265 = vpop.f32.mrb[0].mxu0
    %v266 = vadd.f32 %v173, %v265
    %v267 = vpop.f32.mrb[0].mxu0
    %v268 = vpop.f32.mrb[0].mxu0
    %v269 = vadd.f32 %v176, %v268
    %v270 = vpop.f32.mrb[0].mxu0
    %271 = vmatprep.mubr.bf16.mxu0 0
    %272 = vmatmul.mubr.bf16.gmra.mrb[0].mxu0 %v229
    %v273 = vpop.f32.mrb[0].mxu0
    %v274 = vadd.f32 %v181, %v273
    %v275 = vpop.f32.mrb[0].mxu0
    %v276 = vpop.f32.mrb[0].mxu0
    %v277 = vadd.f32 %v184, %v276
    %v278 = vpop.f32.mrb[0].mxu0
    %279 = vdwg.mxu0
    %v280 = vld [vmem:[%s0] sm:$0xc]
    %v281 = vld [vmem:[%s0 + $0x8] sm:$0x3]
    %v282 = vld [vmem:[%s0 + $0xc] sm:$0xc]
    %v283 = vld [vmem:[%s0 + $0x14] sm:$0x3]
    %vm288 = vcmask 1041408
    %vm289 = vcmask 1045508
    %vm290 = vmor %vm288, %vm289
    %v291 = vrot.slane %v280, 6
    %v292 = vrot.slane %v291, 4
    %v293 = vrot.slane %v44, 6
    %v294 = vsel %vm290, %v292, %v293
    %v295 = vrot.slane %v293, 4
    %v296 = vrot.slane %v281, 6
    %v297 = vsel %vm290, %v295, %v296
    %v298 = vrot.slane %v282, 6
    %v299 = vrot.slane %v298, 4
    %v300 = vrot.slane %v46, 6
    %v301 = vsel %vm290, %v299, %v300
    %v302 = vrot.slane %v300, 4
    %v303 = vrot.slane %v283, 6
    %v304 = vsel %vm290, %v302, %v303
    %s305 = scalar_lea.vmem [#allocation2], 80
    %v306 = vld [vmem:[%s305] sm:$0xf]
    %v307 = vld [vmem:[%s305 + $0x4] sm:$0xf]
    %v308 = vld [vmem:[%s305 + $0x8] sm:$0xf]
    %v309 = vld [vmem:[%s305 + $0xc] sm:$0xf]
    %v310 = vld [vmem:[%s305 + $0x10] sm:$0xf]
    %v311 = vld [vmem:[%s305 + $0x14] sm:$0xf]
    %v312 = vld [vmem:[%s305 + $0x18] sm:$0xf]
    %v313 = vld [vmem:[%s305 + $0x1c] sm:$0xf]
    %v314 = vld [vmem:[%s305 + $0x20] sm:$0xf]
    %v315 = vld [vmem:[%s305 + $0x24] sm:$0xf]
    %v316 = vunpack.c.l.b16 %v294
    %v317 = vunpack.c.l.b16 %v297
    %v318 = vunpack.c.l.b16 %v301
    %v319 = vunpack.c.l.b16 %v304
    %v320 = vpack.c.b16 %v317, %v316
    %v321 = vpack.c.b16 %v319, %v318
    %v332 = vunpack.c.l.b16 %v306
    %v333 = vunpack.c.l.b16 %v307
    %v334 = vunpack.c.l.b16 %v308
    %v335 = vunpack.c.l.b16 %v309
    %v336 = vunpack.c.l.b16 %v310
    %v337 = vunpack.c.l.b16 %v311
    %v338 = vunpack.c.l.b16 %v312
    %v339 = vunpack.c.l.b16 %v313
    %v340 = vunpack.c.l.b16 %v314
    %v341 = vunpack.c.l.b16 %v315
    %v342 = vpack.c.b16 %v333, %v332
    %v343 = vpack.c.b16 %v335, %v334
    %v344 = vpack.c.b16 %v337, %v336
    %v345 = vpack.c.b16 %v339, %v338
    %v346 = vpack.c.b16 %v341, %v340
    %v353 = vsel %vm131, %v320, 0
    %v356 = vsel %vm131, %v321, 0
    %358 = vmatprep.subr.bf16.mxu0 0
    %359 = vmatpush1.bf16.msra.mxu0 %v342
    %360 = vmatprep.subr.bf16.mxu0 0
    %361 = vmatpush1.bf16.msra.mxu0 %v343
    %362 = vmatprep.subr.bf16.mxu0 0
    %363 = vmatpush1.bf16.msra.mxu0 %v344
    %364 = vmatprep.subr.bf16.mxu0 0
    %365 = vmatpush1.bf16.msra.mxu0 %v345
    %366 = vmatprep.subr.bf16.mxu0 0
    %367 = vmatpush1.bf16.msra.mxu0 %v346
    %368 = vmatprep.subr.bf16.mxu0 0
    %369 = vmatpush1.bf16.msra.mxu0 0
    %370 = vmatprep.subr.bf16.mxu0 0
    %371 = vmatpush1.bf16.msra.mxu0 0
    %372 = vmatprep.subr.bf16.mxu0 0
    %373 = vmatpush1.bf16.msra.mxu0 0
    %374 = vmatprep.subr.bf16.mxu0 0
    %375 = vmatpush1.bf16.msra.mxu0 0
    %376 = vmatprep.subr.bf16.mxu0 0
    %377 = vmatpush1.bf16.msra.mxu0 0
    %378 = vmatprep.subr.bf16.mxu0 0
    %379 = vmatpush1.bf16.msra.mxu0 0
    %380 = vmatprep.subr.bf16.mxu0 0
    %381 = vmatpush1.bf16.msra.mxu0 0
    %382 = vmatprep.subr.bf16.mxu0 0
    %383 = vmatpush1.bf16.msra.mxu0 0
    %384 = vmatprep.subr.bf16.mxu0 0
    %385 = vmatpush1.bf16.msra.mxu0 0
    %386 = vmatprep.subr.bf16.mxu0 0
    %387 = vmatpush1.bf16.msra.mxu0 0
    %388 = vmatprep.subr.bf16.mxu0 0
    %389 = vmatpush1.bf16.msra.mxu0 0
    %390 = vmatprep.mubr.bf16.mxu0 0
    %391 = vmatmul.mubr.bf16.gmra.mrb[0].mxu0 %v353
    %v392 = vpop.f32.mrb[0].mxu0
    %v393 = vadd.f32 0.0, %v392
    %v394 = vpop.f32.mrb[0].mxu0
    %v395 = vpop.f32.mrb[0].mxu0
    %v396 = vadd.f32 0.0, %v395
    %v397 = vpop.f32.mrb[0].mxu0
    %398 = vmatprep.mubr.bf16.mxu0 0
    %399 = vmatmul.mubr.bf16.gmra.mrb[0].mxu0 %v356
    %v400 = vpop.f32.mrb[0].mxu0
    %v401 = vadd.f32 0.0, %v400
    %v402 = vpop.f32.mrb[0].mxu0
    %v403 = vpop.f32.mrb[0].mxu0
    %v404 = vadd.f32 0.0, %v403
    %v405 = vpop.f32.mrb[0].mxu0
    %406 = vdwg.mxu0
    %v407 = vadd.f32 %v266, %v393
    %v408 = vadd.f32 %v269, %v396
    %v409 = vadd.f32 %v274, %v401
    %v410 = vadd.f32 %v277, %v404
    %v411 = vld [vmem:[%s2] sm:$0xff]
    %v412 = vld [vmem:[%s2 + $0x8] sm:$0xff]
    %v413 = vadd.f32 %v407, %v411
    %v414 = vadd.f32 %v408, %v412
    %v415 = vadd.f32 %v409, %v411
    %v416 = vadd.f32 %v410, %v412
    %417 = vst [vmem:[#allocation5] sm:$0xff] %v413
    %418 = vst [vmem:[#allocation5 + $0x8] sm:$0xff] %v414
    %419 = vst [vmem:[#allocation5 + $0x10] sm:$0xff] %v415
    %420 = vst [vmem:[#allocation5 + $0x18] sm:$0xff] %v416
    %v421 = vld [vmem:[%s3] sm:$0x1]
    %v423 = vlaneseq
    %v424 = vshrl.u32 %v423, 7
    %v425 = vsub.s32 0, %v424
    %v426 = vrot.slane %v421, %v425
    %v428 = vsub.f32 %v413, %v426
    %v429 = vsub.f32 %v414, %v426
    %v430 = vsub.f32 %v415, %v426
    %v431 = vsub.f32 %v416, %v426
    %v432 = vld [vmem:[#allocation6] sm:$0x1]
    %v433 = vadd.f32 %v428, %v429
    %v434 = vadd.f32 %v433, %v430
    %v435 = vadd.f32 %v434, %v431
    %v436 = vrot.slane %v435, 4
    %v437 = vadd.f32 %v435, %v436
    %v438 = vrot.slane %v437, 2
    %v439 = vadd.f32 %v437, %v438
    %v440 = vrot.slane %v439, 1
    %v441 = vadd.f32 %v439, %v440
    %v442 = vadd.f32 %v432, %v441
    %443 = vst [vmem:[#allocation6] sm:$0x1] %v442
    %v444 = vld [vmem:[#allocation8] sm:$0x1]
    %v445 = vmul.f32 %v428, %v428
    %v446 = vmul.f32 %v429, %v429
    %v447 = vmul.f32 %v430, %v430
    %v448 = vmul.f32 %v431, %v431
    %v449 = vadd.f32 %v445, %v446
    %v450 = vadd.f32 %v449, %v447
    %v451 = vadd.f32 %v450, %v448
    %v452 = vrot.slane %v451, 4
    %v453 = vadd.f32 %v451, %v452
    %v454 = vrot.slane %v453, 2
    %v455 = vadd.f32 %v453, %v454
    %v456 = vrot.slane %v455, 1
    %v457 = vadd.f32 %v455, %v456
    %v458 = vadd.f32 %v444, %v457
    %459 = vst [vmem:[#allocation8] sm:$0x1] %v458
    // Predicated region
    $region26: #{tpu_custom_call.1} parent=1 // pred_check
      _
    $region27: #{tpu_custom_call.1} parent=1 // pred_check_branch
      %461 = sbr.rel (0) target = $region29
    $region28: #{tpu_custom_call.1} parent=1 // pred_region
      %s463 = ssub.s32 512, 512
      %464 = vsyncadd [#allocation4], %s463
      %s465 = sshll.u32 [#allocation5], 4
      %s466 = int_to_ptr.vmem [resolvable:$true] %s465
      %471 = dma.vmem_to_hbm [thread:$0]  %s466, 512, %s4, [#allocation4], 128, 128, 8
    $region29: #{tpu_custom_call.1} parent=1 // pred_fallthru
      _
    // Predicated region
    $region30: #{tpu_custom_call.1} parent=1 // pred_check
      _
    $region31: #{tpu_custom_call.1} parent=1 // pred_check_branch
      %473 = sbr.rel (0) target = $region33
    $region32: #{tpu_custom_call.1} parent=1 // pred_region
      %s475 = ssub.s32 16, 16
      %476 = vsyncadd [#allocation7], %s475
      %s478 = sshll.u32 [#allocation6], 4
      %s479 = int_to_ptr.vmem [resolvable:$true] %s478
      %481 = dma.vmem_to_hbm [thread:$0]  %s479, 16, %s5, [#allocation7]
    $region33: #{tpu_custom_call.1} parent=1 // pred_fallthru
      _
    // Predicated region
    $region34: #{tpu_custom_call.1} parent=1 // pred_check
      _
    $region35: #{tpu_custom_call.1} parent=1 // pred_check_branch
      %483 = sbr.rel (0) target = $region37
    $region36: #{tpu_custom_call.1} parent=1 // pred_region
      %s485 = ssub.s32 16, 16
      %486 = vsyncadd [#allocation7], %s485
      %s488 = sshll.u32 [#allocation8], 4
      %s489 = int_to_ptr.vmem [resolvable:$true] %s488
      %491 = dma.vmem_to_hbm [thread:$0]  %s489, 16, %s6, [#allocation7]
    $region37: #{tpu_custom_call.1} parent=1 // pred_fallthru
      _
    // Predicated region
    $region38: #{tpu_custom_call.1} parent=1 // pred_check
      _
    $region39: #{tpu_custom_call.1} parent=1 // pred_check_branch
      %493 = sbr.rel (0) target = $region41
    $region40: #{tpu_custom_call.1} parent=1 // pred_region
      %494 = dma.done [#allocation4], 512
    $region41: #{tpu_custom_call.1} parent=1 // pred_fallthru
      _
    // Predicated region
    $region42: #{tpu_custom_call.1} parent=1 // pred_check
      _
    $region43: #{tpu_custom_call.1} parent=1 // pred_check_branch
      %496 = sbr.rel (0) target = $region45
    $region44: #{tpu_custom_call.1} parent=1 // pred_region
      %497 = dma.done [#allocation7], 16
    $region45: #{tpu_custom_call.1} parent=1 // pred_fallthru
      _
    // Predicated region
    $region46: #{tpu_custom_call.1} parent=1 // pred_check
      _
    $region47: #{tpu_custom_call.1} parent=1 // pred_check_branch
      %499 = sbr.rel (0) target = $region49
    $region48: #{tpu_custom_call.1} parent=1 // pred_region
      %500 = dma.done [#allocation7], 16
    $region49: #{tpu_custom_call.1} parent=1 // pred_fallthru
      _
    %501 = vsyncpa [#allocation3], 1
    %502 = vsyncpa [#allocation4], 1
    %503 = vsyncpa [#allocation7], 1

</llo_original>
